<compile_context>
chip_gen: v5e
topology: v5e:2x2
jax: 0.10.0
libtpu: 0.0.40
codegen_flags: <defaults>
</compile_context>

<pallas_src>
import functools

import jax
import jax.numpy as jnp
from jax.experimental import pallas as pl
from jax.experimental.pallas import tpu as pltpu


_NUM_PARALLEL = 2  # leading "parallel" grid axis; uses both TCs on v7x


def _tv_kernel(x_ref, htv_ref, wtv_ref, *, w):
    """One grid step: accumulate un-masked TV partial sums for one block.

    x_ref:   (BLK, HWpad) VMEM tile (BLK flattened (h, w) image planes)
    htv_ref: (8, HWpad) resident accumulator of (x[p] - x[p - w])**2
    wtv_ref: (8, HWpad) resident accumulator of (x[p] - x[p - 1])**2
    Invalid lanes (wrap-around / padding) are zeroed later in the wrapper.
    """
    @pl.when(pl.program_id(1) == 0)
    def _():
        htv_ref[...] = jnp.zeros_like(htv_ref)
        wtv_ref[...] = jnp.zeros_like(wtv_ref)

    x = x_ref[...].astype(jnp.float32)            # (BLK, HWpad)
    blk, hwp = x.shape

    # Vertical neighbour: x[p] - x[(p - w) % HWpad]  (XLU roll, free slot).
    dh = x - pltpu.roll(x, w, axis=1)
    # Horizontal neighbour: x[p] - x[(p - 1) % HWpad].
    dw = x - pltpu.roll(x, 1, axis=1)

    # Reduce only down to 8 sublane rows: pure VPU vreg adds, lane axis wide.
    htv_ref[...] += jnp.sum((dh * dh).reshape(blk // 8, 8, hwp), axis=0)
    wtv_ref[...] += jnp.sum((dw * dw).reshape(blk // 8, 8, hwp), axis=0)


def _target_block_bytes():
    """~2 MiB blocks for v5e/v6e; ~4 MiB on v7x (3.2 TB/s HBM)."""
    try:
        kind = jax.devices()[0].device_kind.lower()
        if "v7" in kind:
            return 4 << 20
    except Exception:
        pass
    return 2 << 20


def _choose_block_rows(n_rows, hw_pad, target_bytes):
    """Block row count (multiple of 8) giving ~target_bytes f32 per block."""
    rows = (target_bytes // (hw_pad * 4) // 8) * 8
    rows = max(8, rows)
    per_core = pl.cdiv(n_rows, _NUM_PARALLEL)
    per_core = ((per_core + 7) // 8) * 8
    return max(8, min(rows, per_core))


def tv_loss(x, tv_loss_weight=1.0):
    """TVLoss forward: x is NCHW. Returns a scalar float32."""
    b, c, h, w = x.shape
    hw = h * w
    hw_pad = ((hw + 127) // 128) * 128
    n = b * c

    x_flat = x.reshape(n, hw)
    if hw_pad != hw:
        # Lane-pad to a multiple of 128: all vector ops stay unmasked.
        x_flat = jnp.pad(x_flat, ((0, 0), (0, hw_pad - hw)))

    blk = _choose_block_rows(n, hw_pad, _target_block_bytes())
    inner = pl.cdiv(n, _NUM_PARALLEL * blk)
    n_pad = _NUM_PARALLEL * blk * inner
    if n_pad != n:
        # Zero-padded planes contribute exactly 0 to both sums.
        x_flat = jnp.pad(x_flat, ((0, n_pad - n), (0, 0)))

    kernel = functools.partial(_tv_kernel, w=w)

    cost = pl.CostEstimate(
        flops=6 * n_pad * hw_pad,
        transcendentals=0,
        bytes_accessed=n_pad * hw_pad * x_flat.dtype.itemsize
        + 2 * _NUM_PARALLEL * 8 * hw_pad * 4,
    )

    h_part, w_part = pl.pallas_call(
        kernel,
        out_shape=(
            jax.ShapeDtypeStruct((_NUM_PARALLEL * 8, hw_pad), jnp.float32),
            jax.ShapeDtypeStruct((_NUM_PARALLEL * 8, hw_pad), jnp.float32),
        ),
        grid_spec=pltpu.PrefetchScalarGridSpec(
            num_scalar_prefetch=0,
            grid=(_NUM_PARALLEL, inner),
            in_specs=[
                pl.BlockSpec((blk, hw_pad), lambda p, i: (p * inner + i, 0)),
            ],
            out_specs=(
                pl.BlockSpec((8, hw_pad), lambda p, i: (p, 0)),
                pl.BlockSpec((8, hw_pad), lambda p, i: (p, 0)),
            ),
        ),
        compiler_params=pltpu.CompilerParams(
            dimension_semantics=("parallel", "arbitrary"),
            vmem_limit_bytes=48 << 20,
        ),
        cost_estimate=cost,
    )(x_flat)

    # Lane-validity masks, hoisted entirely out of the kernel (they depend
    # only on the lane index, so they commute with the row/step reduction).
    p_idx = jnp.arange(hw_pad, dtype=jnp.int32)
    valid = p_idx < hw
    mask_h = ((p_idx >= w) & valid).astype(jnp.float32)
    mask_w = ((p_idx % w != 0) & valid).astype(jnp.float32)

    count_h = c * (h - 1) * w
    count_w = c * h * (w - 1)
    h_tv = jnp.sum(h_part * mask_h)   # final cross-sublane+lane reduce, once
    w_tv = jnp.sum(w_part * mask_w)
    return tv_loss_weight * 2.0 * (h_tv / count_h + w_tv / count_w) / b


def tv_loss_ref(x, tv_loss_weight=1.0):
    """Pure-JAX reference matching the PyTorch semantics."""
    b, c, h, w = x.shape
    count_h = c * (h - 1) * w
    count_w = c * h * (w - 1)
    h_tv = jnp.sum((x[:, :, 1:, :] - x[:, :, : h - 1, :]).astype(jnp.float32) ** 2)
    w_tv = jnp.sum((x[:, :, :, 1:] - x[:, :, :, : w - 1]).astype(jnp.float32) ** 2)
    return tv_loss_weight * 2.0 * (h_tv / count_h + w_tv / count_w) / b


if __name__ == "__main__":
    key = jax.random.PRNGKey(0)
    x = jax.random.normal(key, (2, 4, 16, 16), dtype=jnp.float32)

    out = jax.block_until_ready(tv_loss(x, tv_loss_weight=1.0))
    ref = jax.block_until_ready(tv_loss_ref(x, tv_loss_weight=1.0))

    assert jnp.allclose(out, ref, rtol=1e-5, atol=1e-5), (out, ref)
    print("KERNEL_OK")
</pallas_src>

<mosaic_0001>
module attributes {stable_mosaic.version = 11 : i64} {
  func.func @_tv_kernel(%arg0: i32, %arg1: i32, %arg2: memref<8x256xf32, #tpu.memory_space<vmem>>, %arg3: memref<8x256xf32, #tpu.memory_space<vmem>>, %arg4: memref<8x256xf32, #tpu.memory_space<vmem>>) attributes {dimension_semantics = [#tpu.dimension_semantics<parallel>, #tpu.dimension_semantics<arbitrary>], iteration_bounds = array<i64: 2, 1>, scalar_prefetch = 0 : i64, scratch_operands = 0 : i64, tpu.core_type = #tpu.core_type<tc>, window_params = [{transform_indices = @transform_0, window_bounds = array<i64: 8, 256>}, {transform_indices = @transform_1, window_bounds = array<i64: 8, 256>}, {transform_indices = @transform_2, window_bounds = array<i64: 8, 256>}]} {
    %c0_i32 = arith.constant 0 : i32
    %0 = arith.cmpi eq, %arg1, %c0_i32 : i32
    %1 = arith.extui %0 : i1 to i32
    %c0_i32_0 = arith.constant 0 : i32
    %2 = arith.cmpi ne, %1, %c0_i32_0 : i32
    scf.if %2 {
      %cst_11 = arith.constant 0.000000e+00 : f32
      %20 = vector.broadcast %cst_11 : f32 to vector<8x256xf32>
      %c0_12 = arith.constant 0 : index
      %c0_13 = arith.constant 0 : index
      %21 = vector.load %arg3[%c0_12, %c0_13] : memref<8x256xf32, #tpu.memory_space<vmem>>, vector<8x256xf32>
      tpu.vector_store %arg3[%c0_12, %c0_13], %20 {strides = array<i32>} : memref<8x256xf32, #tpu.memory_space<vmem>>, vector<8x256xf32>,
      %cst_14 = arith.constant 0.000000e+00 : f32
      %22 = vector.broadcast %cst_14 : f32 to vector<8x256xf32>
      %c0_15 = arith.constant 0 : index
      %c0_16 = arith.constant 0 : index
      %23 = vector.load %arg4[%c0_15, %c0_16] : memref<8x256xf32, #tpu.memory_space<vmem>>, vector<8x256xf32>
      tpu.vector_store %arg4[%c0_15, %c0_16], %22 {strides = array<i32>} : memref<8x256xf32, #tpu.memory_space<vmem>>, vector<8x256xf32>,
    } else {
    }
    %c0 = arith.constant 0 : index
    %c0_1 = arith.constant 0 : index
    %3 = vector.load %arg2[%c0, %c0_1] : memref<8x256xf32, #tpu.memory_space<vmem>>, vector<8x256xf32>
    %c16_i32 = arith.constant 16 : i32
    %4 = tpu.dynamic_rotate %3 by %c16_i32 dim 1 : vector<8x256xf32>, i32 -> vector<8x256xf32>
    %5 = arith.subf %3, %4 : vector<8x256xf32>
    %c1_i32 = arith.constant 1 : i32
    %6 = tpu.dynamic_rotate %3 by %c1_i32 dim 1 : vector<8x256xf32>, i32 -> vector<8x256xf32>
    %7 = arith.subf %3, %6 : vector<8x256xf32>
    %c0_2 = arith.constant 0 : index
    %c0_3 = arith.constant 0 : index
    %8 = vector.load %arg3[%c0_2, %c0_3] : memref<8x256xf32, #tpu.memory_space<vmem>>, vector<8x256xf32>
    %9 = arith.mulf %5, %5 : vector<8x256xf32>
    %10 = vector.shape_cast %9 : vector<8x256xf32> to vector<1x8x256xf32>
    %cst = arith.constant dense<0.000000e+00> : vector<8x256xf32>
    %11 = vector.multi_reduction <add>, %10, %cst [0] : vector<1x8x256xf32> to vector<8x256xf32>
    %12 = arith.addf %8, %11 : vector<8x256xf32>
    %c0_4 = arith.constant 0 : index
    %c0_5 = arith.constant 0 : index
    %13 = vector.load %arg3[%c0_4, %c0_5] : memref<8x256xf32, #tpu.memory_space<vmem>>, vector<8x256xf32>
    tpu.vector_store %arg3[%c0_4, %c0_5], %12 {strides = array<i32>} : memref<8x256xf32, #tpu.memory_space<vmem>>, vector<8x256xf32>,
    %c0_6 = arith.constant 0 : index
    %c0_7 = arith.constant 0 : index
    %14 = vector.load %arg4[%c0_6, %c0_7] : memref<8x256xf32, #tpu.memory_space<vmem>>, vector<8x256xf32>
    %15 = arith.mulf %7, %7 : vector<8x256xf32>
    %16 = vector.shape_cast %15 : vector<8x256xf32> to vector<1x8x256xf32>
    %cst_8 = arith.constant dense<0.000000e+00> : vector<8x256xf32>
    %17 = vector.multi_reduction <add>, %16, %cst_8 [0] : vector<1x8x256xf32> to vector<8x256xf32>
    %18 = arith.addf %14, %17 : vector<8x256xf32>
    %c0_9 = arith.constant 0 : index
    %c0_10 = arith.constant 0 : index
    %19 = vector.load %arg4[%c0_9, %c0_10] : memref<8x256xf32, #tpu.memory_space<vmem>>, vector<8x256xf32>
    tpu.vector_store %arg4[%c0_9, %c0_10], %18 {strides = array<i32>} : memref<8x256xf32, #tpu.memory_space<vmem>>, vector<8x256xf32>,
    return
  }
  func.func @transform_0(%arg0: i32, %arg1: i32) -> (i32, i32) {
    %c1_i32 = arith.constant 1 : i32
    %0 = arith.muli %arg0, %c1_i32 : i32
    %1 = arith.addi %0, %arg1 : i32
    %c0_i32 = arith.constant 0 : i32
    %c0_i32_0 = arith.constant 0 : i32
    return %1, %c0_i32 : i32, i32
  }
  func.func @transform_1(%arg0: i32, %arg1: i32) -> (i32, i32) {
    %c0_i32 = arith.constant 0 : i32
    %c0_i32_0 = arith.constant 0 : i32
    return %arg0, %c0_i32 : i32, i32
  }
  func.func @transform_2(%arg0: i32, %arg1: i32) -> (i32, i32) {
    %c0_i32 = arith.constant 0 : i32
    %c0_i32_0 = arith.constant 0 : i32
    return %arg0, %c0_i32 : i32, i32
  }
}

</mosaic_0001>

<llo_original>
// kernel: tpu_custom_call.1
$region0: #{tpu_custom_call.1}
  #allocation0 [shape = 'u32[]', space=smem, size = 0x4, offset = 0x4, fixed_abs, tag = 'smem constant byte address 0x4 - core index']
  #allocation1 [shape = 'u32[72,128]{1,0:T(1,128)}', space=vmem, size = 0x9000, scoped, tag = 'internal scratch']
  %s0 = inlined_call_operand.hbm [shape: f32[16,256], index: 0, kind: input, shape index: {}]
  %s1 = inlined_call_operand.hbm [shape: f32[16,256], index: 1, kind: output, shape index: {0}]
  %s2 = inlined_call_operand.hbm [shape: f32[16,256], index: 2, kind: output, shape index: {1}]
  %3 = xla_tuple %s1, %s2
  %s4 = sld [smem:[#allocation0]]
  $region53: #{tpu_custom_call.1} parent=0
    _
  %s6 = ssub.s32 1, %s4
  %s7 = scalar_select 0, %s6, %s4
  $region1: #{tpu_custom_call.1} parent=0
    #allocation2 [shape = 'u8[16384]{0}', space=vmem, size = 0x4000, scoped, tag = 'input window, operand 0']
    #allocation3 [shape = 's32[2]{0}', space=sflag, size = 0x8, scoped, tag = 'scoped memory for tpu_custom_call.1']
    #allocation4 [shape = 's32[2]{0}', space=sflag, size = 0x8, scoped, tag = 'scoped memory for tpu_custom_call.1']
    #allocation5 [shape = 'u8[16384]{0}', space=vmem, size = 0x4000, scoped, tag = 'output window, operand 0']
    #allocation6 [shape = 'u8[16384]{0}', space=vmem, size = 0x4000, scoped, tag = 'output window, operand 1']
    #allocation7 [shape = 's32[2]{0}', space=sflag, size = 0x8, scoped, tag = 'scoped memory for tpu_custom_call.1']
    %8 = vsyncpa [#allocation3], 0
    %s9 = scalar_lea.sflag [#allocation3], 1
    %10 = vsyncpa %s9, 0
    %11 = vsyncpa [#allocation4], 0
    %s12 = scalar_lea.sflag [#allocation4], 1
    %13 = vsyncpa %s12, 0
    %14 = vsyncpa [#allocation7], 0
    %s15 = scalar_lea.sflag [#allocation7], 1
    %16 = vsyncpa %s15, 0
    loop: start=0, step=1, limit=4
    $region2: #{tpu_custom_call.1} parent=1 // loop_pre_header
      _
    $region3: #{tpu_custom_call.1} parent=1 // loop_header
      %s18 = sphi 0, %s22
      %p19 = scmp.ge.s32.totalorder %s18, 4
      %s25 = sphi 0, %s37
      %s26 = sphi 0, %s33
      %s27 = sphi 0, %s25
      %s28 = sphi 0, %s26
      %s29 = sphi 0, %s27
      %s30 = sphi 0, %s28
      %s42 = sphi 0, %s44
      %s45 = sphi 0, %s42
      %s46 = sphi 0, %s45
      %s62 = sphi 0, %s46
      %s68 = sphi 0, %s70
      %s71 = sphi 0, %s68
      %s72 = sphi 0, %s71
      %s88 = sphi 0, %s72
      %s94 = sphi 0, %s96
      %s97 = sphi 0, %s94
      %s98 = sphi 0, %s97
      %s114 = sphi 0, %s98
    $region4: #{tpu_custom_call.1} parent=1 // loop_header_branch
      %21 = sbr.rel (%p19) target = $region8
    $region5: #{tpu_custom_call.1} parent=1 // loop_body
      %s23 = ssub.s32 %s18, 1
      %s24 = ssub.s32 %s18, 2
      %s31 = sadd.s32 1, %s26
      %p32 = scmp.ge.s32.totalorder %s31, 1
      %s33 = scalar_select %p32, 0, %s31
      %s34 = sadd.s32 1, %s25
      %s35 = scalar_select %p32, %s34, %s25
      %p36 = scmp.ge.s32.totalorder %s35, 2
      %s37 = scalar_select %p36, 0, %s35
      %s38 = sadd.s32 %s25, %s26
      %s39 = sadd.s32 %s37, %s33
      %s40 = ssub.s32 %s38, %s39
      %p41 = scmp.eq.s32.totalorder %s40, 0
      %s43 = sadd.s32 %s42, 1
      %s44 = scalar_select %p41, %s42, %s43
      %p47 = pneg %p41
      %p48 = scmp.eq.s32.totalorder %s18, 1
      %p49 = por %p47, %p48
      %p50 = scmp.ne.s32.totalorder %s42, %s45
      %p51 = scmp.eq.s32.totalorder %s18, 0
      %p52 = por %p50, %p51
      %p53 = scmp.ne.s32.totalorder %s42, %s45
      %p54 = scmp.eq.s32.totalorder %s23, 1
      %p55 = por %p53, %p54
      %p56 = scmp.ne.s32.totalorder %s45, %s46
      %p57 = scmp.eq.s32.totalorder %s23, 0
      %p58 = por %p56, %p57
      %p59 = scmp.ne.s32.totalorder %s45, %s46
      %p60 = scmp.eq.s32.totalorder %s24, 1
      %p61 = por %p59, %p60
      %p63 = scmp.ne.s32.totalorder %s46, %s62
      %p64 = scmp.eq.s32.totalorder %s24, 0
      %p65 = por %p63, %p64
      %s66 = ssub.s32 %s25, %s37
      %p67 = scmp.eq.s32.totalorder %s66, 0
      %s69 = sadd.s32 %s68, 1
      %s70 = scalar_select %p67, %s68, %s69
      %p73 = pneg %p67
      %p74 = scmp.eq.s32.totalorder %s18, 1
      %p75 = por %p73, %p74
      %p76 = scmp.ne.s32.totalorder %s68, %s71
      %p77 = scmp.eq.s32.totalorder %s18, 0
      %p78 = por %p76, %p77
      %p79 = scmp.ne.s32.totalorder %s68, %s71
      %p80 = scmp.eq.s32.totalorder %s23, 1
      %p81 = por %p79, %p80
      %p82 = scmp.ne.s32.totalorder %s71, %s72
      %p83 = scmp.eq.s32.totalorder %s23, 0
      %p84 = por %p82, %p83
      %p85 = scmp.ne.s32.totalorder %s71, %s72
      %p86 = scmp.eq.s32.totalorder %s24, 1
      %p87 = por %p85, %p86
      %p89 = scmp.ne.s32.totalorder %s72, %s88
      %p90 = scmp.eq.s32.totalorder %s24, 0
      %p91 = por %p89, %p90
      %s92 = ssub.s32 %s25, %s37
      %p93 = scmp.eq.s32.totalorder %s92, 0
      %s95 = sadd.s32 %s94, 1
      %s96 = scalar_select %p93, %s94, %s95
      %p99 = pneg %p93
      %p100 = scmp.eq.s32.totalorder %s18, 1
      %p101 = por %p99, %p100
      %p102 = scmp.ne.s32.totalorder %s94, %s97
      %p103 = scmp.eq.s32.totalorder %s18, 0
      %p104 = por %p102, %p103
      %p105 = scmp.ne.s32.totalorder %s94, %s97
      %p106 = scmp.eq.s32.totalorder %s23, 1
      %p107 = por %p105, %p106
      %p108 = scmp.ne.s32.totalorder %s97, %s98
      %p109 = scmp.eq.s32.totalorder %s23, 0
      %p110 = por %p108, %p109
      %p111 = scmp.ne.s32.totalorder %s97, %s98
      %p112 = scmp.eq.s32.totalorder %s24, 1
      %p113 = por %p111, %p112
      %p115 = scmp.ne.s32.totalorder %s98, %s114
      %p116 = scmp.eq.s32.totalorder %s24, 0
      %p117 = por %p115, %p116
      %p118 = scmp.le.s32.totalorder 1, %s18
      %p119 = scmp.lt.s32.totalorder %s18, 3
      %p120 = pnand %p118, %p119
      %p121 = pneg %p120
      // Predicated region
      $region9: #{tpu_custom_call.1} parent=5 // pred_check
        _
      $region10: #{tpu_custom_call.1} parent=5 // pred_check_branch
        %123 = sbr.rel (%p120) target = $region12
      $region11: #{tpu_custom_call.1} parent=5 // pred_region
        %s124 = ssub.s32 %s18, 1
      $region12: #{tpu_custom_call.1} parent=5 // pred_fallthru
        _
      %p125 = scmp.lt.s32.totalorder %s18, 2
      // Predicated region
      $region13: #{tpu_custom_call.1} parent=5 // pred_check
        %p126 = pneg %p125
      $region14: #{tpu_custom_call.1} parent=5 // pred_check_branch
        %128 = sbr.rel (%p126) target = $region16
      $region15: #{tpu_custom_call.1} parent=5 // pred_region
        // Predicated region
        $region17: #{tpu_custom_call.1} parent=15 // pred_check
          %p129 = pneg %p52
        $region18: #{tpu_custom_call.1} parent=15 // pred_check_branch
          %131 = sbr.rel (%p129) target = $region20
        $region19: #{tpu_custom_call.1} parent=15 // pred_region
          %s132 = sand.u32 %s42, 1
          %s133 = scalar_lea.sflag [#allocation3], %s132
          %s134 = sand.u32 %s42, 1
          %s135 = smul.addr %s134, 16
          %s136 = scalar_lea.vmem [#allocation2], %s135
          %s137 = sadd.s32 %s25, %s26
          %139 = vsyncadd %s133, 0
          %s140 = smul.addr %s137, 2
          %s141 = smul.addr %s140, 8
          %s142 = scalar_lea.hbm %s0, %s141
          %s144 = sshll.u32 %s142, 4
          %s145 = int_to_ptr.hbm [resolvable:$true] %s144
          %s146 = sshll.u32 %s136, 4
          %s147 = int_to_ptr.vmem [resolvable:$true] %s146
          %149 = dma.hbm_to_vmem [thread:$0]  %s145, 256, %s147, %s133
        $region20: #{tpu_custom_call.1} parent=15 // pred_fallthru
          _
      $region16: #{tpu_custom_call.1} parent=5 // pred_fallthru
        _
      %p150 = scmp.le.s32.totalorder 1, %s18
      %p151 = scmp.lt.s32.totalorder %s18, 3
      %p152 = pnand %p150, %p151
      %p153 = pneg %p152
      // Predicated region
      $region21: #{tpu_custom_call.1} parent=5 // pred_check
        _
      $region22: #{tpu_custom_call.1} parent=5 // pred_check_branch
        %155 = sbr.rel (%p152) target = $region24
      $region23: #{tpu_custom_call.1} parent=5 // pred_region
        %s156 = ssub.s32 %s18, 1
        %s157 = sand.u32 %s45, 1
        %s158 = scalar_lea.sflag [#allocation3], %s157
        %s159 = sand.u32 %s45, 1
        %s160 = smul.addr %s159, 16
        %s161 = scalar_lea.vmem [#allocation2], %s160
        // Predicated region
        $region25: #{tpu_custom_call.1} parent=23 // pred_check
          %p162 = pneg %p58
        $region26: #{tpu_custom_call.1} parent=23 // pred_check_branch
          %164 = sbr.rel (%p162) target = $region28
        $region27: #{tpu_custom_call.1} parent=23 // pred_region
          %166 = dma.done %s158, 256
        $region28: #{tpu_custom_call.1} parent=23 // pred_fallthru
          _
        %s167 = sand.u32 %s45, 1
        %s168 = scalar_lea.sflag [#allocation3], %s167
        %s169 = sand.u32 %s45, 1
        %s170 = smul.addr %s169, 16
        %s171 = scalar_lea.vmem [#allocation2], %s170
        %p172 = pneg %p58
        %p173 = pneg %p55
        %p174 = pneg %p84
        %p175 = pneg %p81
        %s176 = sand.u32 %s71, 1
        %s177 = scalar_lea.sflag [#allocation4], %s176
        %s178 = sand.u32 %s71, 1
        %s179 = smul.addr %s178, 16
        %s180 = scalar_lea.vmem [#allocation5], %s179
        %p181 = pneg %p110
        %p182 = pneg %p107
        %s183 = sand.u32 %s97, 1
        %s184 = scalar_lea.sflag [#allocation7], %s183
        %s185 = sand.u32 %s97, 1
        %s186 = smul.addr %s185, 16
        %s187 = scalar_lea.vmem [#allocation6], %s186
        %s188 = sadd.s32 %s27, %s28
        %p189 = scmp.eq.s32.totalorder %s28, 0
        // Predicated region
        $region29: #{tpu_custom_call.1} parent=23 // pred_check
          %p190 = pneg %p189
        $region30: #{tpu_custom_call.1} parent=23 // pred_check_branch
          %192 = sbr.rel (%p190) target = $region32
        $region31: #{tpu_custom_call.1} parent=23 // pred_region
          %193 = vst [vmem:[%s180] sm:$0xff] 0.0
          %194 = vst [vmem:[%s180 + $0x8] sm:$0xff] 0.0
          %195 = vst [vmem:[%s187] sm:$0xff] 0.0
          %196 = vst [vmem:[%s187 + $0x8] sm:$0xff] 0.0
        $region32: #{tpu_custom_call.1} parent=23 // pred_fallthru
          _
        %v197 = vld [vmem:[%s161] sm:$0xff]
        %v198 = vld [vmem:[%s161 + $0x8] sm:$0xff]
        %199 = vrot.lane.b32.xlu0 %v197, 16
        %v200 = vpop.permute.xlu0 %199
        %201 = vrot.lane.b32.xlu0 %v198, 16
        %v202 = vpop.permute.xlu0 %201
        %v203 = vlaneseq
        %v204 = vand.u32 %v203, 127
        %vm205 = vcmp.lt.s32.totalorder %v204, 16
        %v206 = vsel %vm205, %v200, %v202
        %v207 = vsel %vm205, %v202, %v200
        %v208 = vsub.f32 %v197, %v207
        %v209 = vsub.f32 %v198, %v206
        %210 = vrot.lane.b32.xlu0 %v197, 1
        %v211 = vpop.permute.xlu0 %210
        %212 = vrot.lane.b32.xlu0 %v198, 1
        %v213 = vpop.permute.xlu0 %212
        %vm214 = vcmp.lt.s32.totalorder %v204, 1
        %v215 = vsel %vm214, %v211, %v213
        %v216 = vsel %vm214, %v213, %v211
        %v217 = vsub.f32 %v197, %v216
        %v218 = vsub.f32 %v198, %v215
        %v219 = vld [vmem:[%s180] sm:$0xff]
        %v220 = vld [vmem:[%s180 + $0x8] sm:$0xff]
        %v221 = vmul.f32 %v208, %v208
        %v222 = vmul.f32 %v209, %v209
        %v223 = vadd.f32 %v221, 0.0
        %v224 = vadd.f32 %v222, 0.0
        %v225 = vadd.f32 %v219, %v223
        %v226 = vadd.f32 %v220, %v224
        %227 = vst [vmem:[%s180] sm:$0xff] %v225
        %228 = vst [vmem:[%s180 + $0x8] sm:$0xff] %v226
        %v229 = vld [vmem:[%s187] sm:$0xff]
        %v230 = vld [vmem:[%s187 + $0x8] sm:$0xff]
        %v231 = vmul.f32 %v217, %v217
        %v232 = vmul.f32 %v218, %v218
        %v233 = vadd.f32 %v231, 0.0
        %v234 = vadd.f32 %v232, 0.0
        %v235 = vadd.f32 %v229, %v233
        %v236 = vadd.f32 %v230, %v234
        %237 = vst [vmem:[%s187] sm:$0xff] %v235
        %238 = vst [vmem:[%s187 + $0x8] sm:$0xff] %v236
        %s239 = sand.u32 %s71, 1
        %s240 = scalar_lea.sflag [#allocation4], %s239
        %s241 = sand.u32 %s71, 1
        %s242 = smul.addr %s241, 16
        %s243 = scalar_lea.vmem [#allocation5], %s242
        %s244 = sand.u32 %s97, 1
        %s245 = scalar_lea.sflag [#allocation7], %s244
        %s246 = sand.u32 %s97, 1
        %s247 = smul.addr %s246, 16
        %s248 = scalar_lea.vmem [#allocation6], %s247
        // Predicated region
        $region33: #{tpu_custom_call.1} parent=23 // pred_check
          %p249 = pneg %p81
        $region34: #{tpu_custom_call.1} parent=23 // pred_check_branch
          %251 = sbr.rel (%p249) target = $region36
        $region35: #{tpu_custom_call.1} parent=23 // pred_region
          %253 = vsyncadd %s240, 0
          %s254 = smul.addr %s27, 2
          %s255 = smul.addr %s254, 8
          %s256 = scalar_lea.hbm %s1, %s255
          %s258 = sshll.u32 %s243, 4
          %s259 = int_to_ptr.vmem [resolvable:$true] %s258
          %s260 = sshll.u32 %s256, 4
          %s261 = int_to_ptr.hbm [resolvable:$true] %s260
          %263 = dma.vmem_to_hbm [thread:$0]  %s259, 256, %s261, %s240
        $region36: #{tpu_custom_call.1} parent=23 // pred_fallthru
          _
        // Predicated region
        $region37: #{tpu_custom_call.1} parent=23 // pred_check
          %p264 = pneg %p107
        $region38: #{tpu_custom_call.1} parent=23 // pred_check_branch
          %266 = sbr.rel (%p264) target = $region40
        $region39: #{tpu_custom_call.1} parent=23 // pred_region
          %268 = vsyncadd %s245, 0
          %s269 = smul.addr %s27, 2
          %s270 = smul.addr %s269, 8
          %s271 = scalar_lea.hbm %s2, %s270
          %s273 = sshll.u32 %s248, 4
          %s274 = int_to_ptr.vmem [resolvable:$true] %s273
          %s275 = sshll.u32 %s271, 4
          %s276 = int_to_ptr.hbm [resolvable:$true] %s275
          %278 = dma.vmem_to_hbm [thread:$0]  %s274, 256, %s276, %s245
        $region40: #{tpu_custom_call.1} parent=23 // pred_fallthru
          _
      $region24: #{tpu_custom_call.1} parent=5 // pred_fallthru
        _
      %p279 = scmp.le.s32.totalorder 2, %s18
      // Predicated region
      $region41: #{tpu_custom_call.1} parent=5 // pred_check
        %p280 = pneg %p279
      $region42: #{tpu_custom_call.1} parent=5 // pred_check_branch
        %282 = sbr.rel (%p280) target = $region44
      $region43: #{tpu_custom_call.1} parent=5 // pred_region
        %s283 = ssub.s32 %s18, 2
        // Predicated region
        $region45: #{tpu_custom_call.1} parent=43 // pred_check
          %p284 = pneg %p87
        $region46: #{tpu_custom_call.1} parent=43 // pred_check_branch
          %286 = sbr.rel (%p284) target = $region48
        $region47: #{tpu_custom_call.1} parent=43 // pred_region
          %s287 = sand.u32 %s72, 1
          %s288 = scalar_lea.sflag [#allocation4], %s287
          %s289 = sand.u32 %s72, 1
          %s290 = smul.addr %s289, 16
          %s291 = scalar_lea.vmem [#allocation5], %s290
          %293 = dma.done %s288, 256
        $region48: #{tpu_custom_call.1} parent=43 // pred_fallthru
          _
        // Predicated region
        $region49: #{tpu_custom_call.1} parent=43 // pred_check
          %p294 = pneg %p113
        $region50: #{tpu_custom_call.1} parent=43 // pred_check_branch
          %296 = sbr.rel (%p294) target = $region52
        $region51: #{tpu_custom_call.1} parent=43 // pred_region
          %s297 = sand.u32 %s98, 1
          %s298 = scalar_lea.sflag [#allocation7], %s297
          %s299 = sand.u32 %s98, 1
          %s300 = smul.addr %s299, 16
          %s301 = scalar_lea.vmem [#allocation6], %s300
          %303 = dma.done %s298, 256
        $region52: #{tpu_custom_call.1} parent=43 // pred_fallthru
          _
      $region44: #{tpu_custom_call.1} parent=5 // pred_fallthru
        _
    $region6: #{tpu_custom_call.1} parent=1 // loop_footer
      %s22 = sadd.s32 1, %s18
    $region7: #{tpu_custom_call.1} parent=1 // loop_footer_branch
      %17 = sbr.rel target = $region3
    $region8: #{tpu_custom_call.1} parent=1 // loop_exit
      _
    %304 = vsyncpa [#allocation3], 1
    %s305 = scalar_lea.sflag [#allocation3], 1
    %306 = vsyncpa %s305, 1
    %307 = vsyncpa [#allocation4], 1
    %s308 = scalar_lea.sflag [#allocation4], 1
    %309 = vsyncpa %s308, 1
    %310 = vsyncpa [#allocation7], 1
    %s311 = scalar_lea.sflag [#allocation7], 1
    %312 = vsyncpa %s311, 1

</llo_original>
